<compile_context>
chip_gen: v7x
topology: tpu7x:2x2x1
jax: 0.10.0
libtpu: 0.0.40
codegen_flags: <defaults>
</compile_context>

<pallas_src>
import jax
import jax.numpy as jnp
from jax import lax
from jax.experimental import pallas as pl
from jax.experimental.pallas import tpu as pltpu

_WIDTH = 512          # lane-dense slab width (multiple of 128)
_TILE_R_MAX = 1024    # rows per block -> 1024*512*4B = 2 MiB f32 per block
_TWO_PI = 6.283185307179586
_INV_2_23 = 1.0 / float(1 << 23)


def _fmix32(h):
    """murmur3 finalizer: strong 32-bit avalanche mixer (uint32 in / out)."""
    h = h ^ (h >> jnp.uint32(16))
    h = h * jnp.uint32(0x85EBCA6B)
    h = h ^ (h >> jnp.uint32(13))
    h = h * jnp.uint32(0xC2B2AE35)
    h = h ^ (h >> jnp.uint32(16))
    return h


def _gaussian_noise_kernel(seed_ref, sigma_ref, x_ref, o_ref):
    rows, width = x_ref.shape
    half = width // 2
    pid = pl.program_id(0)

    # Globally unique counter per Box-Muller pair (one pair -> two samples).
    row = lax.broadcasted_iota(jnp.int32, (rows, half), 0)
    col = lax.broadcasted_iota(jnp.int32, (rows, half), 1)
    gidx = ((pid * rows + row) * half + col).astype(jnp.uint32)

    seed_u = seed_ref[0].astype(jnp.uint32)
    k = (gidx + seed_u * jnp.uint32(0x9E3779B9)) * jnp.uint32(2654435761)

    # Two independent 32-bit streams from the same counter (different salts).
    bits1 = _fmix32(k ^ jnp.uint32(0x68BC21EB))
    bits2 = _fmix32(k ^ jnp.uint32(0x02E5BE93))

    # Uniforms: u1 in (0, 1] (never 0 -> log is safe), u2 in [0, 1).
    u1 = ((bits1 >> jnp.uint32(9)).astype(jnp.int32) + 1).astype(jnp.float32) * _INV_2_23
    u2 = (bits2 >> jnp.uint32(9)).astype(jnp.int32).astype(jnp.float32) * _INV_2_23

    # Box-Muller, both branches (halves RNG + EUP work per element).
    r = jnp.sqrt(-2.0 * jnp.log(u1))
    theta = _TWO_PI * u2
    z1 = r * jnp.cos(theta)
    z2 = r * jnp.sin(theta)
    noise = jnp.concatenate([z1, z2], axis=1)

    sigma = sigma_ref[0]
    xf = x_ref[...].astype(jnp.float32)
    o_ref[...] = (xf + noise * sigma).astype(o_ref.dtype)


@jax.jit
def gaussian_noise(x, sigma, seed):
    """y = x + N(0, sigma^2) noise, computed in a single Pallas TPU kernel."""
    orig_shape = x.shape
    orig_dtype = x.dtype

    n = x.size
    flat = x.reshape(-1)
    pad = (-n) % _WIDTH
    if pad:  # small (< 512 elem) tail pad only when needed
        flat = jnp.pad(flat, (0, pad))
    rows = flat.shape[0] // _WIDTH
    x2d = flat.reshape(rows, _WIDTH)

    tile_r = min(_TILE_R_MAX, rows)     # full-dim block for small inputs
    grid = pl.cdiv(rows, tile_r)

    seed_arr = jnp.asarray(seed, dtype=jnp.int32).reshape(1)
    sigma_arr = jnp.asarray(sigma, dtype=jnp.float32).reshape(1)

    out2d = pl.pallas_call(
        _gaussian_noise_kernel,
        out_shape=jax.ShapeDtypeStruct((rows, _WIDTH), orig_dtype),
        grid=(grid,),
        in_specs=[
            pl.BlockSpec(memory_space=pltpu.MemorySpace.SMEM),   # seed scalar
            pl.BlockSpec(memory_space=pltpu.MemorySpace.SMEM),   # sigma scalar
            pl.BlockSpec((tile_r, _WIDTH), lambda i: (i, 0)),    # x tile
        ],
        out_specs=pl.BlockSpec((tile_r, _WIDTH), lambda i: (i, 0)),
        compiler_params=pltpu.CompilerParams(
            dimension_semantics=("parallel",)),
    )(seed_arr, sigma_arr, x2d)

    out = out2d.reshape(-1)
    if pad:
        out = out[:n]
    return out.reshape(orig_shape)


class GaussianNoise:
    """JAX/Pallas port of the PyTorch GaussianNoise module."""

    def __init__(self, sigma=0.1):
        # Non-trainable scalar "parameter".
        self.sigma = jnp.asarray(sigma, dtype=jnp.float32)

    def __call__(self, x, seed=0):
        return gaussian_noise(x, self.sigma, seed)


if __name__ == "__main__":
    key = jax.random.PRNGKey(0)
    # Small NCHW measurements, consistent with typical physics-operator inputs.
    x = jax.random.normal(key, (2, 4, 16, 16), dtype=jnp.float32)

    module = GaussianNoise(sigma=0.1)
    y = module(x, seed=1234)
    y = jax.block_until_ready(y)

    # Sanity checks: shape/dtype preserved, noise has roughly sigma-scale std.
    assert y.shape == x.shape and y.dtype == x.dtype
    noise = y - x
    std = float(jnp.std(noise))
    mean = float(jnp.mean(noise))
    assert 0.05 < std < 0.2, f"unexpected noise std {std}"
    assert abs(mean) < 0.05, f"unexpected noise mean {mean}"

    print("KERNEL_OK")
</pallas_src>

<mosaic_0001>
module attributes {stable_mosaic.version = 11 : i64} {
  func.func @_gaussian_noise_kernel(%arg0: i32, %arg1: memref<1xi32, #tpu.memory_space<smem>>, %arg2: memref<1xf32, #tpu.memory_space<smem>>, %arg3: memref<4x512xf32, #tpu.memory_space<vmem>>, %arg4: memref<4x512xf32, #tpu.memory_space<vmem>>) attributes {dimension_semantics = [#tpu.dimension_semantics<parallel>], iteration_bounds = array<i64: 1>, scalar_prefetch = 0 : i64, scratch_operands = 0 : i64, tpu.core_type = #tpu.core_type<tc>, window_params = [{transform_indices = @transform_0, window_bounds = array<i64: 1>}, {transform_indices = @transform_1, window_bounds = array<i64: 1>}, {transform_indices = @transform_2, window_bounds = array<i64: 4, 512>}, {transform_indices = @transform_3, window_bounds = array<i64: 4, 512>}]} {
    %0 = tpu.iota {dimensions = array<i32: 0>} : vector<4x256xi32>
    %1 = tpu.iota {dimensions = array<i32: 1>} : vector<4x256xi32>
    %c4_i32 = arith.constant 4 : i32
    %2 = arith.muli %arg0, %c4_i32 : i32
    %3 = vector.broadcast %2 : i32 to vector<4x256xi32>
    %4 = arith.addi %3, %0 : vector<4x256xi32>
    %c256_i32 = arith.constant 256 : i32
    %5 = vector.broadcast %c256_i32 : i32 to vector<4x256xi32>
    %6 = arith.muli %4, %5 : vector<4x256xi32>
    %7 = arith.addi %6, %1 : vector<4x256xi32>
    %c0 = arith.constant 0 : index
    %8 = memref.load %arg1[%c0] : memref<1xi32, #tpu.memory_space<smem>>
    %c-1640531527_i32 = arith.constant -1640531527 : i32
    %9 = arith.muli %8, %c-1640531527_i32 : i32
    %10 = vector.broadcast %9 : i32 to vector<4x256xi32>
    %11 = arith.addi %7, %10 : vector<4x256xi32>
    %c-1640531535_i32 = arith.constant -1640531535 : i32
    %12 = vector.broadcast %c-1640531535_i32 : i32 to vector<4x256xi32>
    %13 = arith.muli %11, %12 : vector<4x256xi32>
    %c1757159915_i32 = arith.constant 1757159915 : i32
    %14 = vector.broadcast %c1757159915_i32 : i32 to vector<4x256xi32>
    %15 = arith.xori %13, %14 : vector<4x256xi32>
    %c16_i32 = arith.constant 16 : i32
    %16 = vector.broadcast %c16_i32 : i32 to vector<4x256xi32>
    %17 = arith.shrui %15, %16 : vector<4x256xi32>
    %18 = arith.xori %15, %17 : vector<4x256xi32>
    %c-2048144789_i32 = arith.constant -2048144789 : i32
    %19 = vector.broadcast %c-2048144789_i32 : i32 to vector<4x256xi32>
    %20 = arith.muli %18, %19 : vector<4x256xi32>
    %c13_i32 = arith.constant 13 : i32
    %21 = vector.broadcast %c13_i32 : i32 to vector<4x256xi32>
    %22 = arith.shrui %20, %21 : vector<4x256xi32>
    %23 = arith.xori %20, %22 : vector<4x256xi32>
    %c-1028477387_i32 = arith.constant -1028477387 : i32
    %24 = vector.broadcast %c-1028477387_i32 : i32 to vector<4x256xi32>
    %25 = arith.muli %23, %24 : vector<4x256xi32>
    %c16_i32_0 = arith.constant 16 : i32
    %26 = vector.broadcast %c16_i32_0 : i32 to vector<4x256xi32>
    %27 = arith.shrui %25, %26 : vector<4x256xi32>
    %28 = arith.xori %25, %27 : vector<4x256xi32>
    %c48610963_i32 = arith.constant 48610963 : i32
    %29 = vector.broadcast %c48610963_i32 : i32 to vector<4x256xi32>
    %30 = arith.xori %13, %29 : vector<4x256xi32>
    %c16_i32_1 = arith.constant 16 : i32
    %31 = vector.broadcast %c16_i32_1 : i32 to vector<4x256xi32>
    %32 = arith.shrui %30, %31 : vector<4x256xi32>
    %33 = arith.xori %30, %32 : vector<4x256xi32>
    %c-2048144789_i32_2 = arith.constant -2048144789 : i32
    %34 = vector.broadcast %c-2048144789_i32_2 : i32 to vector<4x256xi32>
    %35 = arith.muli %33, %34 : vector<4x256xi32>
    %c13_i32_3 = arith.constant 13 : i32
    %36 = vector.broadcast %c13_i32_3 : i32 to vector<4x256xi32>
    %37 = arith.shrui %35, %36 : vector<4x256xi32>
    %38 = arith.xori %35, %37 : vector<4x256xi32>
    %c-1028477387_i32_4 = arith.constant -1028477387 : i32
    %39 = vector.broadcast %c-1028477387_i32_4 : i32 to vector<4x256xi32>
    %40 = arith.muli %38, %39 : vector<4x256xi32>
    %c16_i32_5 = arith.constant 16 : i32
    %41 = vector.broadcast %c16_i32_5 : i32 to vector<4x256xi32>
    %42 = arith.shrui %40, %41 : vector<4x256xi32>
    %43 = arith.xori %40, %42 : vector<4x256xi32>
    %c9_i32 = arith.constant 9 : i32
    %44 = vector.broadcast %c9_i32 : i32 to vector<4x256xi32>
    %45 = arith.shrui %28, %44 : vector<4x256xi32>
    %c1_i32 = arith.constant 1 : i32
    %46 = vector.broadcast %c1_i32 : i32 to vector<4x256xi32>
    %47 = arith.addi %45, %46 : vector<4x256xi32>
    %48 = arith.sitofp %47 : vector<4x256xi32> to vector<4x256xf32>
    %cst = arith.constant 1.1920929E-7 : f32
    %49 = vector.broadcast %cst : f32 to vector<4x256xf32>
    %50 = arith.mulf %48, %49 : vector<4x256xf32>
    %c9_i32_6 = arith.constant 9 : i32
    %51 = vector.broadcast %c9_i32_6 : i32 to vector<4x256xi32>
    %52 = arith.shrui %43, %51 : vector<4x256xi32>
    %53 = arith.sitofp %52 : vector<4x256xi32> to vector<4x256xf32>
    %cst_7 = arith.constant 1.1920929E-7 : f32
    %54 = vector.broadcast %cst_7 : f32 to vector<4x256xf32>
    %55 = arith.mulf %53, %54 : vector<4x256xf32>
    %56 = math.log %50 : vector<4x256xf32>
    %cst_8 = arith.constant -2.000000e+00 : f32
    %57 = vector.broadcast %cst_8 : f32 to vector<4x256xf32>
    %58 = arith.mulf %57, %56 : vector<4x256xf32>
    %59 = math.sqrt %58 : vector<4x256xf32>
    %cst_9 = arith.constant 6.28318548 : f32
    %60 = vector.broadcast %cst_9 : f32 to vector<4x256xf32>
    %61 = arith.mulf %60, %55 : vector<4x256xf32>
    %62 = math.cos %61 : vector<4x256xf32>
    %63 = arith.mulf %59, %62 : vector<4x256xf32>
    %64 = math.sin %61 : vector<4x256xf32>
    %65 = arith.mulf %59, %64 : vector<4x256xf32>
    %66 = tpu.concatenate %63, %65 in 1 : vector<4x256xf32>, vector<4x256xf32> -> vector<4x512xf32>
    %c0_10 = arith.constant 0 : index
    %67 = memref.load %arg2[%c0_10] : memref<1xf32, #tpu.memory_space<smem>>
    %c0_11 = arith.constant 0 : index
    %c0_12 = arith.constant 0 : index
    %68 = vector.load %arg3[%c0_11, %c0_12] : memref<4x512xf32, #tpu.memory_space<vmem>>, vector<4x512xf32>
    %69 = vector.broadcast %67 : f32 to vector<4x512xf32>
    %70 = arith.mulf %66, %69 : vector<4x512xf32>
    %71 = arith.addf %68, %70 : vector<4x512xf32>
    %c0_13 = arith.constant 0 : index
    %c0_14 = arith.constant 0 : index
    %72 = vector.load %arg4[%c0_13, %c0_14] : memref<4x512xf32, #tpu.memory_space<vmem>>, vector<4x512xf32>
    tpu.vector_store %arg4[%c0_13, %c0_14], %71 {strides = array<i32>} : memref<4x512xf32, #tpu.memory_space<vmem>>, vector<4x512xf32>,
    return
  }
  func.func @transform_0(%arg0: i32) -> i32 {
    %c0_i32 = arith.constant 0 : i32
    %c0_i32_0 = arith.constant 0 : i32
    return %c0_i32 : i32
  }
  func.func @transform_1(%arg0: i32) -> i32 {
    %c0_i32 = arith.constant 0 : i32
    %c0_i32_0 = arith.constant 0 : i32
    return %c0_i32 : i32
  }
  func.func @transform_2(%arg0: i32) -> (i32, i32) {
    %c0_i32 = arith.constant 0 : i32
    %c0_i32_0 = arith.constant 0 : i32
    return %arg0, %c0_i32 : i32, i32
  }
  func.func @transform_3(%arg0: i32) -> (i32, i32) {
    %c0_i32 = arith.constant 0 : i32
    %c0_i32_0 = arith.constant 0 : i32
    return %arg0, %c0_i32 : i32, i32
  }
}

</mosaic_0001>

<llo_original>
// kernel: gaussian_noise.1
$region0: #{gaussian_noise.1}
  #allocation0 [shape = 'u32[]', space=smem, size = 0x4, offset = 0x4, fixed_abs, tag = 'smem constant byte address 0x4 - core index']
  #allocation1 [shape = 'u32[144,128]{1,0:T(1,128)}', space=vmem, size = 0x12000, scoped, tag = 'internal scratch']
  #allocation2 [shape = 's32[1]{0:T(128)S(6)}', space=smem, size = 0x200, scoped, tag = 'scoped memory for gaussian_noise.1']
  #allocation3 [shape = 'f32[1]{0:T(128)S(6)}', space=smem, size = 0x200, scoped, tag = 'scoped memory for gaussian_noise.1']
  %s0 = inlined_call_operand.<no memory space> [shape: s32[1], index: 0, kind: input, shape index: {}]
  %s1 = inlined_call_operand.<no memory space> [shape: f32[1], index: 1, kind: input, shape index: {}]
  %s2 = inlined_call_operand.vmem [shape: f32[4,512], index: 2, kind: input, shape index: {}]
  %s3 = inlined_call_operand.vmem [shape: f32[4,512], index: 3, kind: output, shape index: {}]
  %s4 = sld [smem:[#allocation0]]
  $region22: #{gaussian_noise.1} parent=0
    _
  %s6 = ssub.s32 1, %s4
  %s7 = scalar_select 0, %s6, %s4
  %8 = sst [smem:[#allocation2]] %s0
  %9 = sst [smem:[#allocation3]] %s1
  // Predicated region
  $region2: #{gaussian_noise.1} parent=0 // pred_check
    _
  $region3: #{gaussian_noise.1} parent=0 // pred_check_branch
    %11 = sbr.rel (0) target = $region5
  $region4: #{gaussian_noise.1} parent=0 // pred_region
    _
  $region5: #{gaussian_noise.1} parent=0 // pred_fallthru
    _
  // Predicated region
  $region6: #{gaussian_noise.1} parent=0 // pred_check
    _
  $region7: #{gaussian_noise.1} parent=0 // pred_check_branch
    %13 = sbr.rel (0) target = $region9
  $region8: #{gaussian_noise.1} parent=0 // pred_region
    _
  $region9: #{gaussian_noise.1} parent=0 // pred_fallthru
    _
  // Predicated region
  $region10: #{gaussian_noise.1} parent=0 // pred_check
    _
  $region11: #{gaussian_noise.1} parent=0 // pred_check_branch
    %15 = sbr.rel (0) target = $region13
  $region12: #{gaussian_noise.1} parent=0 // pred_region
    _
  $region13: #{gaussian_noise.1} parent=0 // pred_fallthru
    _
  %v16 = vlaneseq
  %v17 = vshrl.u32 %v16, 7
  %v18 = vlaneseq
  %v19 = vand.u32 %v18, 127
  %v20 = vadd.s32 %v19, 128
  %s21 = smul.u32 0, 4
  %v22 = vstv %s21
  %v23 = vadd.s32 %v22, %v17
  %v24 = vmul.u32 %v23, 256
  %v25 = vadd.s32 %v24, %v19
  %v26 = vadd.s32 %v24, %v20
  %s27 = sld [smem:[#allocation2]]
  %s28 = smul.u32 %s27, 2654435769
  %v29 = vstv %s28
  %v30 = vadd.s32 %v25, %v29
  %v31 = vadd.s32 %v26, %v29
  %v32 = vmul.u32 %v30, 2654435761
  %v33 = vmul.u32 %v31, 2654435761
  %v34 = vxor.u32 %v32, 1757159915
  %v35 = vxor.u32 %v33, 1757159915
  %v36 = vshrl.u32 %v34, 16
  %v37 = vshrl.u32 %v35, 16
  %v38 = vxor.u32 %v34, %v36
  %v39 = vxor.u32 %v35, %v37
  %v40 = vmul.u32 %v38, 2246822507
  %v41 = vmul.u32 %v39, 2246822507
  %v42 = vshrl.u32 %v40, 13
  %v43 = vshrl.u32 %v41, 13
  %v44 = vxor.u32 %v40, %v42
  %v45 = vxor.u32 %v41, %v43
  %v46 = vmul.u32 %v44, 3266489909
  %v47 = vmul.u32 %v45, 3266489909
  %v48 = vshrl.u32 %v46, 16
  %v49 = vshrl.u32 %v47, 16
  %v50 = vxor.u32 %v46, %v48
  %v51 = vxor.u32 %v47, %v49
  %v52 = vxor.u32 %v32, 48610963
  %v53 = vxor.u32 %v33, 48610963
  %v54 = vshrl.u32 %v52, 16
  %v55 = vshrl.u32 %v53, 16
  %v56 = vxor.u32 %v52, %v54
  %v57 = vxor.u32 %v53, %v55
  %v58 = vmul.u32 %v56, 2246822507
  %v59 = vmul.u32 %v57, 2246822507
  %v60 = vshrl.u32 %v58, 13
  %v61 = vshrl.u32 %v59, 13
  %v62 = vxor.u32 %v58, %v60
  %v63 = vxor.u32 %v59, %v61
  %v64 = vmul.u32 %v62, 3266489909
  %v65 = vmul.u32 %v63, 3266489909
  %v66 = vshrl.u32 %v64, 16
  %v67 = vshrl.u32 %v65, 16
  %v68 = vxor.u32 %v64, %v66
  %v69 = vxor.u32 %v65, %v67
  %v70 = vshrl.u32 %v50, 9
  %v71 = vshrl.u32 %v51, 9
  %v72 = vadd.s32 %v70, 1
  %v73 = vadd.s32 %v71, 1
  %v74 = vcvt.s32.f32 %v72
  %v75 = vcvt.s32.f32 %v73
  %v76 = vmul.f32 %v74, 1.1920929e-07
  %v77 = vmul.f32 %v75, 1.1920929e-07
  %v78 = vshrl.u32 %v68, 9
  %v79 = vshrl.u32 %v69, 9
  %v80 = vcvt.s32.f32 %v78
  %v81 = vcvt.s32.f32 %v79
  %v82 = vmul.f32 %v80, 1.1920929e-07
  %v83 = vmul.f32 %v81, 1.1920929e-07
  %v84 = vlog2.pop %v76
  %v85 = vmul.f32 %v84, 0.6931472
  %v86 = vlog2.pop %v77
  %v87 = vmul.f32 %v86, 0.6931472
  %v88 = vmul.f32 %v85, -2.0
  %v89 = vmul.f32 %v87, -2.0
  %v90 = vrsqrt.pop %v88
  %v91 = vmul.f32 %v88, %v90
  %vm92 = vcmp.eq.f32.partialorder %v88, inf
  %v93 = vsel %vm92, %v88, %v91
  %vm94 = vcmp.eq.f32.partialorder %v88, 0.0
  %v95 = vand.u32 %v88, 2147483648
  %v96 = vsel %vm94, %v95, %v93
  %v97 = vrsqrt.pop %v89
  %v98 = vmul.f32 %v89, %v97
  %vm99 = vcmp.eq.f32.partialorder %v89, inf
  %v100 = vsel %vm99, %v89, %v98
  %vm101 = vcmp.eq.f32.partialorder %v89, 0.0
  %v102 = vand.u32 %v89, 2147483648
  %v103 = vsel %vm101, %v102, %v100
  %v104 = vmul.f32 %v82, 6.2831855
  %v105 = vmul.f32 %v83, 6.2831855
  %v106 = vand.u32 2147483647, %v104
  %vm107 = vcmp.le.f32.partialorder %v106, 0.7853982
  %vm108 = vcmp.lt.s32.totalorder %v104, 0
  %v109 = vand.u32 %v104, 2139095040
  %v110 = vshrl.u32 %v109, 23
  %v111 = vsub.s32 %v110, 127
  %v112 = vand.u32 2147483647, %v104
  %v113 = vand.u32 %v112, 8388607
  %v114 = vor.u32 %v113, 8388608
  %v115 = vsub.s32 0, %v114
  %v116 = vadd.s32 %v111, 1
  %vm117 = vcmp.gt.s32.totalorder %v116, 0
  %v118 = vsel %vm117, %v116, 0
  %v119 = vshrl.u32 %v118, 5
  %v120 = vand.u32 %v118, 31
  %v121 = vsub.s32 32, %v120
  %v122 = vshrl.u32 683565275, %v121
  %v123 = vshll.u32 683565275, %v120
  %v124 = vshrl.u32 2475754826, %v121
  %v125 = vor.u32 %v123, %v124
  %v126 = vshll.u32 2475754826, %v120
  %v127 = vshrl.u32 2131351028, %v121
  %v128 = vor.u32 %v126, %v127
  %v129 = vshll.u32 2131351028, %v120
  %v130 = vshrl.u32 2102212464, %v121
  %v131 = vor.u32 %v129, %v130
  %v132 = vshll.u32 2102212464, %v120
  %v133 = vshrl.u32 920167782, %v121
  %v134 = vor.u32 %v132, %v133
  %v135 = vshll.u32 920167782, %v120
  %v136 = vshrl.u32 1326507024, %v121
  %v137 = vor.u32 %v135, %v136
  %vm138 = vcmp.lt.s32.totalorder %v119, 1
  %vm139 = vcmp.lt.s32.totalorder %v119, 2
  %vm140 = vcmp.lt.s32.totalorder %v119, 3
  %vm141 = vcmp.lt.s32.totalorder %v119, 4
  %v142 = vsel %vm138, %v122, %v125
  %v143 = vsel %vm141, %v131, 2102212464
  %v144 = vsel %vm140, %v128, %v143
  %v145 = vsel %vm139, %v142, %v144
  %v146 = vsel %vm138, %v125, %v128
  %v147 = vsel %vm141, %v134, 920167782
  %v148 = vsel %vm140, %v131, %v147
  %v149 = vsel %vm139, %v146, %v148
  %v150 = vsel %vm138, %v128, %v131
  %v151 = vsel %vm141, %v137, 1326507024
  %v152 = vsel %vm140, %v134, %v151
  %v153 = vsel %vm139, %v150, %v152
  %v154 = vshll.u32 %v114, 8
  %v155 = vmul.u32.u64.compose %v154, %v153
  %v156 = vextract.low.u32 %v155
  %v157 = vextract.high.u32 %v155
  %v158 = vmul.u32.u64.compose %v154, %v149
  %v159 = vextract.low.u32 %v158
  %v160 = vextract.high.u32 %v158
  %v161 = vmul.u32 %v154, %v145
  %v162 = vadd.s32 %v157, %v159
  %vm163 = vc.u32 %v157, %v159
  %v164 = vadd.s32 %v160, 1
  %v165 = vsel %vm163, %v164, %v160
  %v166 = vadd.s32 %v161, %v165
  %v167 = vadd.s32 %v166, 536870912
  %v168 = vshrl.u32 %v167, 30
  %v169 = vshll.u32 %v168, 30
  %v170 = vsub.s32 %v166, %v169
  %vm171 = vcmp.lt.s32.totalorder %v170, 0
  %v172 = vsub.s32 0, %v170
  %v173 = vsel %vm171, %v172, %v170
  %v174 = vclz %v173
  %v175 = vsub.s32 %v174, 2
  %vm176 = vcmp.gt.s32.totalorder 0, %v175
  %v177 = vsel %vm176, 0, %v175
  %v178 = vsub.s32 32, %v177
  %v179 = vshll.u32 %v170, %v177
  %v180 = vshrl.u32 %v162, %v178
  %v181 = vor.u32 %v179, %v180
  %v182 = vsub.s32 4294967266, %v177
  %v183 = vadd.s32 %v182, 127
  %v184 = vshll.u32 %v183, 23
  %v185 = vor.u32 4788187, %v184
  %v186 = vand.u32 2147483647, %v185
  %v188 = vcvt.s32.f32 %v181
  %v189 = vmul.f32 %v188, %v186
  %v190 = vxor.u32 %v189, 2147483648
  %v191 = vsel %vm108, %v190, %v189
  %v192 = vsub.s32 4, %v168
  %v193 = vsel %vm108, %v192, %v168
  %v194 = vsel %vm107, %v104, %v191
  %v195 = vsel %vm107, 0, %v193
  %v196 = vcosq.f32.pop %v194
  %v197 = vsinq.f32.pop %v194
  %vm198 = vweird.f32 %v104
  %v199 = vand.u32 %v195, 3
  %vm200 = vcmp.lt.s32.totalorder %v199, 2
  %vm201 = vcmp.eq.s32.totalorder %v199, 0
  %v202 = vxor.u32 %v197, 2147483648
  %v203 = vsel %vm201, %v196, %v202
  %vm204 = vcmp.eq.s32.totalorder %v199, 2
  %v205 = vxor.u32 %v196, 2147483648
  %v206 = vsel %vm204, %v205, %v197
  %v207 = vsel %vm200, %v203, %v206
  %v208 = vsel %vm198, nan, %v207
  %v209 = vand.u32 2147483647, %v105
  %vm210 = vcmp.le.f32.partialorder %v209, 0.7853982
  %vm211 = vcmp.lt.s32.totalorder %v105, 0
  %v212 = vand.u32 %v105, 2139095040
  %v213 = vshrl.u32 %v212, 23
  %v214 = vsub.s32 %v213, 127
  %v215 = vand.u32 2147483647, %v105
  %v216 = vand.u32 %v215, 8388607
  %v217 = vor.u32 %v216, 8388608
  %v218 = vsub.s32 0, %v217
  %v219 = vadd.s32 %v214, 1
  %vm220 = vcmp.gt.s32.totalorder %v219, 0
  %v221 = vsel %vm220, %v219, 0
  %v222 = vshrl.u32 %v221, 5
  %v223 = vand.u32 %v221, 31
  %v224 = vsub.s32 32, %v223
  %v225 = vshrl.u32 683565275, %v224
  %v226 = vshll.u32 683565275, %v223
  %v227 = vshrl.u32 2475754826, %v224
  %v228 = vor.u32 %v226, %v227
  %v229 = vshll.u32 2475754826, %v223
  %v230 = vshrl.u32 2131351028, %v224
  %v231 = vor.u32 %v229, %v230
  %v232 = vshll.u32 2131351028, %v223
  %v233 = vshrl.u32 2102212464, %v224
  %v234 = vor.u32 %v232, %v233
  %v235 = vshll.u32 2102212464, %v223
  %v236 = vshrl.u32 920167782, %v224
  %v237 = vor.u32 %v235, %v236
  %v238 = vshll.u32 920167782, %v223
  %v239 = vshrl.u32 1326507024, %v224
  %v240 = vor.u32 %v238, %v239
  %vm241 = vcmp.lt.s32.totalorder %v222, 1
  %vm242 = vcmp.lt.s32.totalorder %v222, 2
  %vm243 = vcmp.lt.s32.totalorder %v222, 3
  %vm244 = vcmp.lt.s32.totalorder %v222, 4
  %v245 = vsel %vm241, %v225, %v228
  %v246 = vsel %vm244, %v234, 2102212464
  %v247 = vsel %vm243, %v231, %v246
  %v248 = vsel %vm242, %v245, %v247
  %v249 = vsel %vm241, %v228, %v231
  %v250 = vsel %vm244, %v237, 920167782
  %v251 = vsel %vm243, %v234, %v250
  %v252 = vsel %vm242, %v249, %v251
  %v253 = vsel %vm241, %v231, %v234
  %v254 = vsel %vm244, %v240, 1326507024
  %v255 = vsel %vm243, %v237, %v254
  %v256 = vsel %vm242, %v253, %v255
  %v257 = vshll.u32 %v217, 8
  %v258 = vmul.u32.u64.compose %v257, %v256
  %v259 = vextract.low.u32 %v258
  %v260 = vextract.high.u32 %v258
  %v261 = vmul.u32.u64.compose %v257, %v252
  %v262 = vextract.low.u32 %v261
  %v263 = vextract.high.u32 %v261
  %v264 = vmul.u32 %v257, %v248
  %v265 = vadd.s32 %v260, %v262
  %vm266 = vc.u32 %v260, %v262
  %v267 = vadd.s32 %v263, 1
  %v268 = vsel %vm266, %v267, %v263
  %v269 = vadd.s32 %v264, %v268
  %v270 = vadd.s32 %v269, 536870912
  %v271 = vshrl.u32 %v270, 30
  %v272 = vshll.u32 %v271, 30
  %v273 = vsub.s32 %v269, %v272
  %vm274 = vcmp.lt.s32.totalorder %v273, 0
  %v275 = vsub.s32 0, %v273
  %v276 = vsel %vm274, %v275, %v273
  %v277 = vclz %v276
  %v278 = vsub.s32 %v277, 2
  %vm279 = vcmp.gt.s32.totalorder 0, %v278
  %v280 = vsel %vm279, 0, %v278
  %v281 = vsub.s32 32, %v280
  %v282 = vshll.u32 %v273, %v280
  %v283 = vshrl.u32 %v265, %v281
  %v284 = vor.u32 %v282, %v283
  %v285 = vsub.s32 4294967266, %v280
  %v286 = vadd.s32 %v285, 127
  %v287 = vshll.u32 %v286, 23
  %v288 = vor.u32 4788187, %v287
  %v289 = vand.u32 2147483647, %v288
  %v291 = vcvt.s32.f32 %v284
  %v292 = vmul.f32 %v291, %v289
  %v293 = vxor.u32 %v292, 2147483648
  %v294 = vsel %vm211, %v293, %v292
  %v295 = vsub.s32 4, %v271
  %v296 = vsel %vm211, %v295, %v271
  %v297 = vsel %vm210, %v105, %v294
  %v298 = vsel %vm210, 0, %v296
  %v299 = vcosq.f32.pop %v297
  %v300 = vsinq.f32.pop %v297
  %vm301 = vweird.f32 %v105
  %v302 = vand.u32 %v298, 3
  %vm303 = vcmp.lt.s32.totalorder %v302, 2
  %vm304 = vcmp.eq.s32.totalorder %v302, 0
  %v305 = vxor.u32 %v300, 2147483648
  %v306 = vsel %vm304, %v299, %v305
  %vm307 = vcmp.eq.s32.totalorder %v302, 2
  %v308 = vxor.u32 %v299, 2147483648
  %v309 = vsel %vm307, %v308, %v300
  %v310 = vsel %vm303, %v306, %v309
  %v311 = vsel %vm301, nan, %v310
  %v312 = vmul.f32 %v96, %v208
  %v313 = vmul.f32 %v103, %v311
  %v314 = vand.u32 2147483647, %v104
  %vm315 = vcmp.le.f32.partialorder %v314, 0.7853982
  %vm316 = vcmp.lt.s32.totalorder %v104, 0
  %v317 = vand.u32 %v104, 2139095040
  %v318 = vshrl.u32 %v317, 23
  %v319 = vsub.s32 %v318, 127
  %v320 = vand.u32 2147483647, %v104
  %v321 = vand.u32 %v320, 8388607
  %v322 = vor.u32 %v321, 8388608
  %v323 = vsub.s32 0, %v322
  %v324 = vadd.s32 %v319, 1
  %vm325 = vcmp.gt.s32.totalorder %v324, 0
  %v326 = vsel %vm325, %v324, 0
  %v327 = vshrl.u32 %v326, 5
  %v328 = vand.u32 %v326, 31
  %v329 = vsub.s32 32, %v328
  %v330 = vshrl.u32 683565275, %v329
  %v331 = vshll.u32 683565275, %v328
  %v332 = vshrl.u32 2475754826, %v329
  %v333 = vor.u32 %v331, %v332
  %v334 = vshll.u32 2475754826, %v328
  %v335 = vshrl.u32 2131351028, %v329
  %v336 = vor.u32 %v334, %v335
  %v337 = vshll.u32 2131351028, %v328
  %v338 = vshrl.u32 2102212464, %v329
  %v339 = vor.u32 %v337, %v338
  %v340 = vshll.u32 2102212464, %v328
  %v341 = vshrl.u32 920167782, %v329
  %v342 = vor.u32 %v340, %v341
  %v343 = vshll.u32 920167782, %v328
  %v344 = vshrl.u32 1326507024, %v329
  %v345 = vor.u32 %v343, %v344
  %vm346 = vcmp.lt.s32.totalorder %v327, 1
  %vm347 = vcmp.lt.s32.totalorder %v327, 2
  %vm348 = vcmp.lt.s32.totalorder %v327, 3
  %vm349 = vcmp.lt.s32.totalorder %v327, 4
  %v350 = vsel %vm346, %v330, %v333
  %v351 = vsel %vm349, %v339, 2102212464
  %v352 = vsel %vm348, %v336, %v351
  %v353 = vsel %vm347, %v350, %v352
  %v354 = vsel %vm346, %v333, %v336
  %v355 = vsel %vm349, %v342, 920167782
  %v356 = vsel %vm348, %v339, %v355
  %v357 = vsel %vm347, %v354, %v356
  %v358 = vsel %vm346, %v336, %v339
  %v359 = vsel %vm349, %v345, 1326507024
  %v360 = vsel %vm348, %v342, %v359
  %v361 = vsel %vm347, %v358, %v360
  %v362 = vshll.u32 %v322, 8
  %v363 = vmul.u32.u64.compose %v362, %v361
  %v364 = vextract.low.u32 %v363
  %v365 = vextract.high.u32 %v363
  %v366 = vmul.u32.u64.compose %v362, %v357
  %v367 = vextract.low.u32 %v366
  %v368 = vextract.high.u32 %v366
  %v369 = vmul.u32 %v362, %v353
  %v370 = vadd.s32 %v365, %v367
  %vm371 = vc.u32 %v365, %v367
  %v372 = vadd.s32 %v368, 1
  %v373 = vsel %vm371, %v372, %v368
  %v374 = vadd.s32 %v369, %v373
  %v375 = vadd.s32 %v374, 536870912
  %v376 = vshrl.u32 %v375, 30
  %v377 = vshll.u32 %v376, 30
  %v378 = vsub.s32 %v374, %v377
  %vm379 = vcmp.lt.s32.totalorder %v378, 0
  %v380 = vsub.s32 0, %v378
  %v381 = vsel %vm379, %v380, %v378
  %v382 = vclz %v381
  %v383 = vsub.s32 %v382, 2
  %vm384 = vcmp.gt.s32.totalorder 0, %v383
  %v385 = vsel %vm384, 0, %v383
  %v386 = vsub.s32 32, %v385
  %v387 = vshll.u32 %v378, %v385
  %v388 = vshrl.u32 %v370, %v386
  %v389 = vor.u32 %v387, %v388
  %v390 = vsub.s32 4294967266, %v385
  %v391 = vadd.s32 %v390, 127
  %v392 = vshll.u32 %v391, 23
  %v393 = vor.u32 4788187, %v392
  %v394 = vand.u32 2147483647, %v393
  %v396 = vcvt.s32.f32 %v389
  %v397 = vmul.f32 %v396, %v394
  %v398 = vxor.u32 %v397, 2147483648
  %v399 = vsel %vm316, %v398, %v397
  %v400 = vsub.s32 4, %v376
  %v401 = vsel %vm316, %v400, %v376
  %v402 = vsel %vm315, %v104, %v399
  %v403 = vsel %vm315, 0, %v401
  %v404 = vcosq.f32.pop %v402
  %v405 = vsinq.f32.pop %v402
  %vm406 = vweird.f32 %v104
  %v407 = vadd.s32 %v403, 3
  %v408 = vand.u32 %v407, 3
  %vm409 = vcmp.lt.s32.totalorder %v408, 2
  %vm410 = vcmp.eq.s32.totalorder %v408, 0
  %v411 = vxor.u32 %v405, 2147483648
  %v412 = vsel %vm410, %v404, %v411
  %vm413 = vcmp.eq.s32.totalorder %v408, 2
  %v414 = vxor.u32 %v404, 2147483648
  %v415 = vsel %vm413, %v414, %v405
  %v416 = vsel %vm409, %v412, %v415
  %v417 = vsel %vm406, nan, %v416
  %v418 = vand.u32 2147483647, %v105
  %vm419 = vcmp.le.f32.partialorder %v418, 0.7853982
  %vm420 = vcmp.lt.s32.totalorder %v105, 0
  %v421 = vand.u32 %v105, 2139095040
  %v422 = vshrl.u32 %v421, 23
  %v423 = vsub.s32 %v422, 127
  %v424 = vand.u32 2147483647, %v105
  %v425 = vand.u32 %v424, 8388607
  %v426 = vor.u32 %v425, 8388608
  %v427 = vsub.s32 0, %v426
  %v428 = vadd.s32 %v423, 1
  %vm429 = vcmp.gt.s32.totalorder %v428, 0
  %v430 = vsel %vm429, %v428, 0
  %v431 = vshrl.u32 %v430, 5
  %v432 = vand.u32 %v430, 31
  %v433 = vsub.s32 32, %v432
  %v434 = vshrl.u32 683565275, %v433
  %v435 = vshll.u32 683565275, %v432
  %v436 = vshrl.u32 2475754826, %v433
  %v437 = vor.u32 %v435, %v436
  %v438 = vshll.u32 2475754826, %v432
  %v439 = vshrl.u32 2131351028, %v433
  %v440 = vor.u32 %v438, %v439
  %v441 = vshll.u32 2131351028, %v432
  %v442 = vshrl.u32 2102212464, %v433
  %v443 = vor.u32 %v441, %v442
  %v444 = vshll.u32 2102212464, %v432
  %v445 = vshrl.u32 920167782, %v433
  %v446 = vor.u32 %v444, %v445
  %v447 = vshll.u32 920167782, %v432
  %v448 = vshrl.u32 1326507024, %v433
  %v449 = vor.u32 %v447, %v448
  %vm450 = vcmp.lt.s32.totalorder %v431, 1
  %vm451 = vcmp.lt.s32.totalorder %v431, 2
  %vm452 = vcmp.lt.s32.totalorder %v431, 3
  %vm453 = vcmp.lt.s32.totalorder %v431, 4
  %v454 = vsel %vm450, %v434, %v437
  %v455 = vsel %vm453, %v443, 2102212464
  %v456 = vsel %vm452, %v440, %v455
  %v457 = vsel %vm451, %v454, %v456
  %v458 = vsel %vm450, %v437, %v440
  %v459 = vsel %vm453, %v446, 920167782
  %v460 = vsel %vm452, %v443, %v459
  %v461 = vsel %vm451, %v458, %v460
  %v462 = vsel %vm450, %v440, %v443
  %v463 = vsel %vm453, %v449, 1326507024
  %v464 = vsel %vm452, %v446, %v463
  %v465 = vsel %vm451, %v462, %v464
  %v466 = vshll.u32 %v426, 8
  %v467 = vmul.u32.u64.compose %v466, %v465
  %v468 = vextract.low.u32 %v467
  %v469 = vextract.high.u32 %v467
  %v470 = vmul.u32.u64.compose %v466, %v461
  %v471 = vextract.low.u32 %v470
  %v472 = vextract.high.u32 %v470
  %v473 = vmul.u32 %v466, %v457
  %v474 = vadd.s32 %v469, %v471
  %vm475 = vc.u32 %v469, %v471
  %v476 = vadd.s32 %v472, 1
  %v477 = vsel %vm475, %v476, %v472
  %v478 = vadd.s32 %v473, %v477
  %v479 = vadd.s32 %v478, 536870912
  %v480 = vshrl.u32 %v479, 30
  %v481 = vshll.u32 %v480, 30
  %v482 = vsub.s32 %v478, %v481
  %vm483 = vcmp.lt.s32.totalorder %v482, 0
  %v484 = vsub.s32 0, %v482
  %v485 = vsel %vm483, %v484, %v482
  %v486 = vclz %v485
  %v487 = vsub.s32 %v486, 2
  %vm488 = vcmp.gt.s32.totalorder 0, %v487
  %v489 = vsel %vm488, 0, %v487
  %v490 = vsub.s32 32, %v489
  %v491 = vshll.u32 %v482, %v489
  %v492 = vshrl.u32 %v474, %v490
  %v493 = vor.u32 %v491, %v492
  %v494 = vsub.s32 4294967266, %v489
  %v495 = vadd.s32 %v494, 127
  %v496 = vshll.u32 %v495, 23
  %v497 = vor.u32 4788187, %v496
  %v498 = vand.u32 2147483647, %v497
  %v500 = vcvt.s32.f32 %v493
  %v501 = vmul.f32 %v500, %v498
  %v502 = vxor.u32 %v501, 2147483648
  %v503 = vsel %vm420, %v502, %v501
  %v504 = vsub.s32 4, %v480
  %v505 = vsel %vm420, %v504, %v480
  %v506 = vsel %vm419, %v105, %v503
  %v507 = vsel %vm419, 0, %v505
  %v508 = vcosq.f32.pop %v506
  %v509 = vsinq.f32.pop %v506
  %vm510 = vweird.f32 %v105
  %v511 = vadd.s32 %v507, 3
  %v512 = vand.u32 %v511, 3
  %vm513 = vcmp.lt.s32.totalorder %v512, 2
  %vm514 = vcmp.eq.s32.totalorder %v512, 0
  %v515 = vxor.u32 %v509, 2147483648
  %v516 = vsel %vm514, %v508, %v515
  %vm517 = vcmp.eq.s32.totalorder %v512, 2
  %v518 = vxor.u32 %v508, 2147483648
  %v519 = vsel %vm517, %v518, %v509
  %v520 = vsel %vm513, %v516, %v519
  %v521 = vsel %vm510, nan, %v520
  %v522 = vmul.f32 %v96, %v417
  %v523 = vmul.f32 %v103, %v521
  %s524 = sld [smem:[#allocation3]]
  %v525 = vld [vmem:[%s2] sm:$0xff]
  %v526 = vld [vmem:[%s2 + $0x8] sm:$0xff]
  %v527 = vstv %s524
  %v528 = vmul.f32 %v312, %v527
  %v529 = vmul.f32 %v313, %v527
  %v530 = vmul.f32 %v522, %v527
  %v531 = vmul.f32 %v523, %v527
  %v536 = vcombine.low %v528, %v529
  %v537 = vcombine.low %v530, %v531
  %v540 = vadd.f32 %v525, %v536
  %v541 = vadd.f32 %v526, %v537
  %542 = vst [vmem:[%s3] sm:$0xff] %v540
  %543 = vst [vmem:[%s3 + $0x8] sm:$0xff] %v541
  // Predicated region
  $region14: #{gaussian_noise.1} parent=0 // pred_check
    _
  $region15: #{gaussian_noise.1} parent=0 // pred_check_branch
    %545 = sbr.rel (0) target = $region17
  $region16: #{gaussian_noise.1} parent=0 // pred_region
    _
  $region17: #{gaussian_noise.1} parent=0 // pred_fallthru
    _
  // Predicated region
  $region18: #{gaussian_noise.1} parent=0 // pred_check
    _
  $region19: #{gaussian_noise.1} parent=0 // pred_check_branch
    %547 = sbr.rel (0) target = $region21
  $region20: #{gaussian_noise.1} parent=0 // pred_region
    _
  $region21: #{gaussian_noise.1} parent=0 // pred_fallthru
    _

</llo_original>
